<compile_context>
chip_gen: v5e
topology: v5e:2x2
jax: 0.10.0
libtpu: 0.0.40
codegen_flags: <defaults>
</compile_context>

<pallas_src>
import numpy as np
import jax
import jax.numpy as jnp
from jax import lax
from jax.experimental import pallas as pl
from jax.experimental.pallas import tpu as pltpu


def _didi_attention_kernel(a_ref, l_ref, len_a_ref, len_l_ref,
                           uw_ref, vw_ref, vb_ref, o_ref):
    TB, Sa, Da = a_ref.shape
    _, Sl, Dl = l_ref.shape

    A = a_ref[...].astype(jnp.float32)             # (TB, Sa, Da)
    Lm = l_ref[...].astype(jnp.float32)            # (TB, Sl, Dl)
    la = len_a_ref[...]                            # (TB, 1) int32
    ll = len_l_ref[...]                            # (TB, 1) int32
    vb = vb_ref[0, 0]                              # scalar bias from SMEM

    # Score projections on the VPU/XLU (avoid M=1 MXU matvecs).
    uw = uw_ref[...][None]                         # (1, 1, Da)
    vw = vw_ref[...][None]                         # (1, 1, Dl)
    a_score = jnp.sum(A * uw, axis=-1)             # (TB, Sa)
    l_score = jnp.sum(Lm * vw, axis=-1) + vb       # (TB, Sl)

    s = jnp.tanh(l_score[:, :, None] + a_score[:, None, :])    # (TB, Sl, Sa)

    # Mask padded positions, mirroring the torch truncation a[:la], l[:ll].
    mask_a = lax.broadcasted_iota(jnp.int32, (TB, 1, Sa), 2) < la[:, :, None]
    mask_l = lax.broadcasted_iota(jnp.int32, (TB, Sl, 1), 1) < ll[:, :, None]
    s = jnp.where(mask_a & mask_l, s, 0.0)

    norm = jnp.sum(s, axis=2, keepdims=True)                    # (TB, Sl, 1)
    # Protect padded l-rows only; valid rows keep exact torch semantics
    # (including its divide-by-near-zero hazard; the module's epsilon is unused).
    norm = jnp.where(mask_l, norm, 1.0)
    att = s * pl.reciprocal(norm, approx=False)                 # (TB, Sl, Sa)

    out = jnp.einsum('bla,bad->bld', att, A,
                     preferred_element_type=jnp.float32)        # (TB, Sl, Da)
    o_ref[...] = out.astype(o_ref.dtype)


def didi_attention(A, L, length_a, length_l, u_w, v_w, v_b, *, block_b=128):
    """A: (B, Sa, Da), L: (B, Sl, Dl); lengths are host-side int sequences."""
    A = jnp.asarray(A)
    L = jnp.asarray(L)
    B, Sa, Da = A.shape
    _, Sl, Dl = L.shape

    la_np = np.asarray(length_a, np.int32).reshape(B)
    ll_np = np.asarray(length_l, np.int32).reshape(B)
    max_l = int(ll_np.max())     # static host-side value (torch pad_sequence length)

    # Batch tile: many batch elements per grid step to amortize per-step overhead.
    if B <= block_b:
        TB = B
    else:
        TB = max(8, (block_b // 8) * 8)          # keep (8,128)-friendly sub-blocks
    B_pad = -(-B // TB) * TB

    if B_pad > B:
        pad = B_pad - B
        A = jnp.pad(A, ((0, pad), (0, 0), (0, 0)))
        L = jnp.pad(L, ((0, pad), (0, 0), (0, 0)))
        la_np = np.pad(la_np, (0, pad))          # padded batches: length 0 -> zero rows
        ll_np = np.pad(ll_np, (0, pad))

    la = jnp.asarray(la_np, jnp.int32).reshape(B_pad, 1)
    ll = jnp.asarray(ll_np, jnp.int32).reshape(B_pad, 1)
    uw = jnp.asarray(u_w, jnp.float32).reshape(1, Da)
    vw = jnp.asarray(v_w, jnp.float32).reshape(1, Dl)
    vb = jnp.asarray(v_b, jnp.float32).reshape(1, 1)

    out = pl.pallas_call(
        _didi_attention_kernel,
        out_shape=jax.ShapeDtypeStruct((B_pad, Sl, Da), A.dtype),
        grid=(B_pad // TB,),
        in_specs=[
            pl.BlockSpec((TB, Sa, Da), lambda i: (i, 0, 0)),     # A (native dtype)
            pl.BlockSpec((TB, Sl, Dl), lambda i: (i, 0, 0)),     # L (native dtype)
            pl.BlockSpec((TB, 1), lambda i: (i, 0)),             # length_a
            pl.BlockSpec((TB, 1), lambda i: (i, 0)),             # length_l
            pl.BlockSpec((1, Da), lambda i: (0, 0)),             # u weights
            pl.BlockSpec((1, Dl), lambda i: (0, 0)),             # v weights
            pl.BlockSpec(memory_space=pltpu.MemorySpace.SMEM),   # v bias (scalar)
        ],
        out_specs=pl.BlockSpec((TB, Sl, Da), lambda i: (i, 0, 0)),
        compiler_params=pltpu.CompilerParams(
            dimension_semantics=("parallel",)),
    )(A, L, la, ll, uw, vw, vb)

    # torch pad_sequence pads only to the longest valid L-sequence in the batch.
    return out[:B, :max_l, :]


def didi_attention_ref(A, L, length_a, length_l, u_w, v_w, v_b):
    """Pure-numpy reference mirroring the PyTorch forward."""
    A = np.asarray(A, np.float32)
    L = np.asarray(L, np.float32)
    u_w = np.asarray(u_w, np.float32).reshape(-1)
    v_w = np.asarray(v_w, np.float32).reshape(-1)
    v_b = float(np.asarray(v_b).reshape(()))
    B, _, Da = A.shape
    max_l = int(max(int(x) for x in length_l))
    out = np.zeros((B, max_l, Da), np.float32)
    for b in range(B):
        la, ll = int(length_a[b]), int(length_l[b])
        a = A[b, :la]                       # (la, Da)
        l = L[b, :ll]                       # (ll, Dl)
        a_score = a @ u_w                   # (la,)
        l_score = l @ v_w + v_b             # (ll,)
        s = np.tanh(l_score[:, None] + a_score[None, :])   # (ll, la)
        norm = s.sum(axis=1, keepdims=True)                # (ll, 1)
        att = s / norm
        out[b, :ll] = att @ a
    return out


if __name__ == "__main__":
    B, Sa, Sl, Da, Dl = 2, 16, 8, 32, 16     # input_a = 32, input_l = 16
    key = jax.random.PRNGKey(0)
    ka, kl, ku, kv = jax.random.split(key, 4)

    A = jax.random.normal(ka, (B, Sa, Da), jnp.float32)
    L = jax.random.normal(kl, (B, Sl, Dl), jnp.float32)
    length_a = np.array([12, 16], np.int32)
    length_l = np.array([5, 8], np.int32)

    # Deterministic synthetic parameters (u: Linear(Da,1,bias=False); v: Linear(Dl,1,bias=True)).
    # Small weights + positive bias keep the softmax-like norm well away from 0.
    u_w = 0.05 * jax.random.normal(ku, (Da,), jnp.float32)
    v_w = 0.05 * jax.random.normal(kv, (Dl,), jnp.float32)
    v_b = jnp.array([1.0], jnp.float32)

    out = didi_attention(A, L, length_a, length_l, u_w, v_w, v_b)
    out = jax.block_until_ready(out)

    ref = didi_attention_ref(A, L, length_a, length_l, u_w, v_w, v_b)
    np.testing.assert_allclose(np.asarray(out), ref, rtol=1e-4, atol=1e-5)
    print("KERNEL_OK")
</pallas_src>

<mosaic_0001>
module attributes {stable_mosaic.version = 11 : i64} {
  func.func @_didi_attention_kernel(%arg0: i32, %arg1: memref<2x16x32xf32, #tpu.memory_space<vmem>>, %arg2: memref<2x8x16xf32, #tpu.memory_space<vmem>>, %arg3: memref<2x1xi32, #tpu.memory_space<vmem>>, %arg4: memref<2x1xi32, #tpu.memory_space<vmem>>, %arg5: memref<1x32xf32, #tpu.memory_space<vmem>>, %arg6: memref<1x16xf32, #tpu.memory_space<vmem>>, %arg7: memref<1x1xf32, #tpu.memory_space<smem>>, %arg8: memref<2x8x32xf32, #tpu.memory_space<vmem>>) attributes {dimension_semantics = [#tpu.dimension_semantics<parallel>], iteration_bounds = array<i64: 1>, scalar_prefetch = 0 : i64, scratch_operands = 0 : i64, tpu.core_type = #tpu.core_type<tc>, window_params = [{transform_indices = @transform_0, window_bounds = array<i64: 2, 16, 32>}, {transform_indices = @transform_1, window_bounds = array<i64: 2, 8, 16>}, {transform_indices = @transform_2, window_bounds = array<i64: 2, 1>}, {transform_indices = @transform_3, window_bounds = array<i64: 2, 1>}, {pipeline_mode = #tpu.pipeline_mode<synchronous>, transform_indices = @transform_4, window_bounds = array<i64: 1, 32>}, {pipeline_mode = #tpu.pipeline_mode<synchronous>, transform_indices = @transform_5, window_bounds = array<i64: 1, 16>}, {transform_indices = @transform_6, window_bounds = array<i64: 1, 1>}, {transform_indices = @transform_7, window_bounds = array<i64: 2, 8, 32>}]} {
    %c0 = arith.constant 0 : index
    %c0_0 = arith.constant 0 : index
    %c0_1 = arith.constant 0 : index
    %0 = vector.load %arg1[%c0, %c0_0, %c0_1] : memref<2x16x32xf32, #tpu.memory_space<vmem>>, vector<2x16x32xf32>
    %c0_2 = arith.constant 0 : index
    %c0_3 = arith.constant 0 : index
    %c0_4 = arith.constant 0 : index
    %1 = vector.load %arg2[%c0_2, %c0_3, %c0_4] : memref<2x8x16xf32, #tpu.memory_space<vmem>>, vector<2x8x16xf32>
    %c0_5 = arith.constant 0 : index
    %c0_6 = arith.constant 0 : index
    %2 = vector.load %arg3[%c0_5, %c0_6] : memref<2x1xi32, #tpu.memory_space<vmem>>, vector<2x1xi32>
    %c0_7 = arith.constant 0 : index
    %c0_8 = arith.constant 0 : index
    %3 = vector.load %arg4[%c0_7, %c0_8] : memref<2x1xi32, #tpu.memory_space<vmem>>, vector<2x1xi32>
    %c0_9 = arith.constant 0 : index
    %c0_10 = arith.constant 0 : index
    %4 = memref.load %arg7[%c0_9, %c0_10] : memref<1x1xf32, #tpu.memory_space<smem>>
    %c0_11 = arith.constant 0 : index
    %c0_12 = arith.constant 0 : index
    %5 = vector.load %arg5[%c0_11, %c0_12] : memref<1x32xf32, #tpu.memory_space<vmem>>, vector<1x32xf32>
    %6 = vector.shape_cast %5 : vector<1x32xf32> to vector<1x1x32xf32>
    %c0_13 = arith.constant 0 : index
    %c0_14 = arith.constant 0 : index
    %7 = vector.load %arg6[%c0_13, %c0_14] : memref<1x16xf32, #tpu.memory_space<vmem>>, vector<1x16xf32>
    %8 = vector.shape_cast %7 : vector<1x16xf32> to vector<1x1x16xf32>
    %9 = vector.broadcast %6 : vector<1x1x32xf32> to vector<2x16x32xf32>
    %10 = arith.mulf %0, %9 : vector<2x16x32xf32>
    %cst = arith.constant dense<0.000000e+00> : vector<2x16xf32>
    %11 = vector.multi_reduction <add>, %10, %cst [2] : vector<2x16x32xf32> to vector<2x16xf32>
    %12 = vector.broadcast %8 : vector<1x1x16xf32> to vector<2x8x16xf32>
    %13 = arith.mulf %1, %12 : vector<2x8x16xf32>
    %cst_15 = arith.constant dense<0.000000e+00> : vector<2x8xf32>
    %14 = vector.multi_reduction <add>, %13, %cst_15 [2] : vector<2x8x16xf32> to vector<2x8xf32>
    %15 = vector.broadcast %4 : f32 to vector<2x8xf32>
    %16 = arith.addf %14, %15 : vector<2x8xf32>
    %17 = vector.shape_cast %16 : vector<2x8xf32> to vector<2x8x1xf32>
    %18 = vector.shape_cast %11 : vector<2x16xf32> to vector<2x1x16xf32>
    %19 = vector.broadcast %17 : vector<2x8x1xf32> to vector<2x8x16xf32>
    %20 = vector.broadcast %18 : vector<2x1x16xf32> to vector<2x8x16xf32>
    %21 = arith.addf %19, %20 : vector<2x8x16xf32>
    %22 = math.tanh %21 : vector<2x8x16xf32>
    %23 = tpu.iota {dimensions = array<i32: 2>} : vector<2x1x16xi32>
    %24 = vector.shape_cast %2 : vector<2x1xi32> to vector<2x1x1xi32>
    %25 = vector.broadcast %24 : vector<2x1x1xi32> to vector<2x1x16xi32>
    %26 = arith.cmpi slt, %23, %25 : vector<2x1x16xi32>
    %27 = tpu.iota {dimensions = array<i32: 1>} : vector<2x8x1xi32>
    %28 = vector.shape_cast %3 : vector<2x1xi32> to vector<2x1x1xi32>
    %29 = vector.broadcast %28 : vector<2x1x1xi32> to vector<2x8x1xi32>
    %30 = arith.cmpi slt, %27, %29 : vector<2x8x1xi32>
    %31 = vector.broadcast %26 : vector<2x1x16xi1> to vector<2x8x16xi1>
    %32 = vector.broadcast %30 : vector<2x8x1xi1> to vector<2x8x16xi1>
    %33 = arith.andi %31, %32 : vector<2x8x16xi1>
    %cst_16 = arith.constant 0.000000e+00 : f32
    %34 = vector.broadcast %cst_16 : f32 to vector<2x8x16xf32>
    %35 = arith.select %33, %22, %34 : vector<2x8x16xi1>, vector<2x8x16xf32>
    %cst_17 = arith.constant dense<0.000000e+00> : vector<2x8xf32>
    %36 = vector.multi_reduction <add>, %35, %cst_17 [2] : vector<2x8x16xf32> to vector<2x8xf32>
    %37 = vector.shape_cast %36 : vector<2x8xf32> to vector<2x8x1xf32>
    %cst_18 = arith.constant 1.000000e+00 : f32
    %38 = vector.broadcast %cst_18 : f32 to vector<2x8x1xf32>
    %39 = arith.select %30, %37, %38 : vector<2x8x1xi1>, vector<2x8x1xf32>
    %40 = tpu.reciprocal %39 : vector<2x8x1xf32> -> vector<2x8x1xf32>
    %41 = vector.broadcast %40 : vector<2x8x1xf32> to vector<2x8x16xf32>
    %42 = arith.mulf %35, %41 : vector<2x8x16xf32>
    "tpu.trace_start"() <{level = 10 : i32, message = "bla,bad->bld"}> : () -> ()
    %cst_19 = arith.constant dense<0.000000e+00> : vector<2x8x32xf32>
    %43 = tpu.matmul %42, %0, %cst_19 {dimension_numbers = #tpu.dot_dimension_numbers<[2], [1], [1], [2], [0, 0, 0, 1, 1, 2], [0], [0]>} : vector<2x8x16xf32>, vector<2x16x32xf32>, vector<2x8x32xf32> -> vector<2x8x32xf32>
    "tpu.trace_stop"() : () -> ()
    %c0_20 = arith.constant 0 : index
    %c0_21 = arith.constant 0 : index
    %c0_22 = arith.constant 0 : index
    %44 = vector.load %arg8[%c0_20, %c0_21, %c0_22] : memref<2x8x32xf32, #tpu.memory_space<vmem>>, vector<2x8x32xf32>
    tpu.vector_store %arg8[%c0_20, %c0_21, %c0_22], %43 {strides = array<i32>} : memref<2x8x32xf32, #tpu.memory_space<vmem>>, vector<2x8x32xf32>,
    return
  }
  func.func @transform_0(%arg0: i32) -> (i32, i32, i32) {
    %c0_i32 = arith.constant 0 : i32
    %c0_i32_0 = arith.constant 0 : i32
    %c0_i32_1 = arith.constant 0 : i32
    return %arg0, %c0_i32, %c0_i32_0 : i32, i32, i32
  }
  func.func @transform_1(%arg0: i32) -> (i32, i32, i32) {
    %c0_i32 = arith.constant 0 : i32
    %c0_i32_0 = arith.constant 0 : i32
    %c0_i32_1 = arith.constant 0 : i32
    return %arg0, %c0_i32, %c0_i32_0 : i32, i32, i32
  }
  func.func @transform_2(%arg0: i32) -> (i32, i32) {
    %c0_i32 = arith.constant 0 : i32
    %c0_i32_0 = arith.constant 0 : i32
    return %arg0, %c0_i32 : i32, i32
  }
  func.func @transform_3(%arg0: i32) -> (i32, i32) {
    %c0_i32 = arith.constant 0 : i32
    %c0_i32_0 = arith.constant 0 : i32
    return %arg0, %c0_i32 : i32, i32
  }
  func.func @transform_4(%arg0: i32) -> (i32, i32) {
    %c0_i32 = arith.constant 0 : i32
    %c0_i32_0 = arith.constant 0 : i32
    %c0_i32_1 = arith.constant 0 : i32
    return %c0_i32, %c0_i32_0 : i32, i32
  }
  func.func @transform_5(%arg0: i32) -> (i32, i32) {
    %c0_i32 = arith.constant 0 : i32
    %c0_i32_0 = arith.constant 0 : i32
    %c0_i32_1 = arith.constant 0 : i32
    return %c0_i32, %c0_i32_0 : i32, i32
  }
  func.func @transform_6(%arg0: i32) -> (i32, i32) {
    %c0_i32 = arith.constant 0 : i32
    %c0_i32_0 = arith.constant 0 : i32
    %c0_i32_1 = arith.constant 0 : i32
    return %c0_i32, %c0_i32_0 : i32, i32
  }
  func.func @transform_7(%arg0: i32) -> (i32, i32, i32) {
    %c0_i32 = arith.constant 0 : i32
    %c0_i32_0 = arith.constant 0 : i32
    %c0_i32_1 = arith.constant 0 : i32
    return %arg0, %c0_i32, %c0_i32_0 : i32, i32, i32
  }
}

</mosaic_0001>

<llo_original>
// kernel: tpu_custom_call.1
$region0: #{tpu_custom_call.1}
  #allocation0 [shape = 'u32[]', space=smem, size = 0x4, offset = 0x4, fixed_abs, tag = 'smem constant byte address 0x4 - core index']
  #allocation1 [shape = 'u32[72,128]{1,0:T(1,128)}', space=vmem, size = 0x9000, scoped, tag = 'internal scratch']
  #allocation2 [shape = 'f32[1,1]{1,0:T(1,128)S(6)}', space=smem, size = 0x200, scoped, tag = 'scoped memory for tpu_custom_call.1']
  %s0 = inlined_call_operand.hbm [shape: f32[2,16,32], index: 0, kind: input, shape index: {}]
  %s1 = inlined_call_operand.hbm [shape: f32[2,8,16], index: 1, kind: input, shape index: {}]
  %s2 = inlined_call_operand.vmem [shape: s32[2,1], index: 2, kind: input, shape index: {}]
  %s3 = inlined_call_operand.vmem [shape: s32[2,1], index: 3, kind: input, shape index: {}]
  %s4 = inlined_call_operand.vmem [shape: f32[1,32], index: 4, kind: input, shape index: {}]
  %s5 = inlined_call_operand.vmem [shape: f32[1,16], index: 5, kind: input, shape index: {}]
  %s6 = inlined_call_operand.<no memory space> [shape: f32[1,1], index: 6, kind: input, shape index: {}]
  %s7 = inlined_call_operand.hbm [shape: f32[2,8,32], index: 7, kind: output, shape index: {}]
  %s8 = sld [smem:[#allocation0]]
  $region46: #{tpu_custom_call.1} parent=0
    _
  %s10 = ssub.s32 1, %s8
  %s11 = scalar_select 0, %s10, %s8
  %12 = sst [smem:[#allocation2]] %s6
  $region1: #{tpu_custom_call.1} parent=0
    #allocation3 [shape = 'u8[16384]{0}', space=vmem, size = 0x4000, scoped, tag = 'input window, operand 0, single buffered']
    #allocation4 [shape = 's32[1]{0}', space=sflag, size = 0x4, scoped, tag = 'scoped memory for tpu_custom_call.1']
    #allocation5 [shape = 's32[1]{0}', space=sflag, size = 0x4, scoped, tag = 'scoped memory for tpu_custom_call.1']
    #allocation6 [shape = 'u8[8192]{0}', space=vmem, size = 0x2000, scoped, tag = 'input window, operand 1, single buffered']
    #allocation7 [shape = 's32[1]{0}', space=sflag, size = 0x4, scoped, tag = 'scoped memory for tpu_custom_call.1']
    #allocation8 [shape = 'u8[8192]{0}', space=vmem, size = 0x2000, scoped, tag = 'output window, operand 0, single buffered']
    %13 = vsyncpa [#allocation4], 0
    %14 = vsyncpa [#allocation7], 0
    %15 = vsyncpa [#allocation5], 0
    // Predicated region
    $region2: #{tpu_custom_call.1} parent=1 // pred_check
      _
    $region3: #{tpu_custom_call.1} parent=1 // pred_check_branch
      %17 = sbr.rel (0) target = $region5
    $region4: #{tpu_custom_call.1} parent=1 // pred_region
      %19 = vsyncadd [#allocation4], 0
      %s20 = sshll.u32 %s0, 4
      %s21 = int_to_ptr.hbm [resolvable:$true] %s20
      %s22 = sshll.u32 [#allocation3], 4
      %s23 = int_to_ptr.vmem [resolvable:$true] %s22
      %28 = dma.hbm_to_vmem [thread:$0]  %s21, 512, %s23, [#allocation4], 128, 128, 8
    $region5: #{tpu_custom_call.1} parent=1 // pred_fallthru
      _
    // Predicated region
    $region6: #{tpu_custom_call.1} parent=1 // pred_check
      _
    $region7: #{tpu_custom_call.1} parent=1 // pred_check_branch
      %30 = sbr.rel (0) target = $region9
    $region8: #{tpu_custom_call.1} parent=1 // pred_region
      %32 = vsyncadd [#allocation7], 0
      %s33 = sshll.u32 %s1, 4
      %s34 = int_to_ptr.hbm [resolvable:$true] %s33
      %s35 = sshll.u32 [#allocation6], 4
      %s36 = int_to_ptr.vmem [resolvable:$true] %s35
      %41 = dma.hbm_to_vmem [thread:$0]  %s34, 256, %s36, [#allocation7], 128, 128, 8
    $region9: #{tpu_custom_call.1} parent=1 // pred_fallthru
      _
    // Predicated region
    $region10: #{tpu_custom_call.1} parent=1 // pred_check
      _
    $region11: #{tpu_custom_call.1} parent=1 // pred_check_branch
      %43 = sbr.rel (0) target = $region13
    $region12: #{tpu_custom_call.1} parent=1 // pred_region
      _
    $region13: #{tpu_custom_call.1} parent=1 // pred_fallthru
      _
    // Predicated region
    $region14: #{tpu_custom_call.1} parent=1 // pred_check
      _
    $region15: #{tpu_custom_call.1} parent=1 // pred_check_branch
      %45 = sbr.rel (0) target = $region17
    $region16: #{tpu_custom_call.1} parent=1 // pred_region
      _
    $region17: #{tpu_custom_call.1} parent=1 // pred_fallthru
      _
    // Predicated region
    $region18: #{tpu_custom_call.1} parent=1 // pred_check
      _
    $region19: #{tpu_custom_call.1} parent=1 // pred_check_branch
      %47 = sbr.rel (0) target = $region21
    $region20: #{tpu_custom_call.1} parent=1 // pred_region
      _
    $region21: #{tpu_custom_call.1} parent=1 // pred_fallthru
      _
    // Predicated region
    $region22: #{tpu_custom_call.1} parent=1 // pred_check
      _
    $region23: #{tpu_custom_call.1} parent=1 // pred_check_branch
      %49 = sbr.rel (0) target = $region25
    $region24: #{tpu_custom_call.1} parent=1 // pred_region
      _
    $region25: #{tpu_custom_call.1} parent=1 // pred_fallthru
      _
    // Predicated region
    $region26: #{tpu_custom_call.1} parent=1 // pred_check
      _
    $region27: #{tpu_custom_call.1} parent=1 // pred_check_branch
      %51 = sbr.rel (0) target = $region29
    $region28: #{tpu_custom_call.1} parent=1 // pred_region
      _
    $region29: #{tpu_custom_call.1} parent=1 // pred_fallthru
      _
    // Predicated region
    $region30: #{tpu_custom_call.1} parent=1 // pred_check
      _
    $region31: #{tpu_custom_call.1} parent=1 // pred_check_branch
      %53 = sbr.rel (0) target = $region33
    $region32: #{tpu_custom_call.1} parent=1 // pred_region
      %55 = dma.done [#allocation4], 512
    $region33: #{tpu_custom_call.1} parent=1 // pred_fallthru
      _
    // Predicated region
    $region34: #{tpu_custom_call.1} parent=1 // pred_check
      _
    $region35: #{tpu_custom_call.1} parent=1 // pred_check_branch
      %57 = sbr.rel (0) target = $region37
    $region36: #{tpu_custom_call.1} parent=1 // pred_region
      %59 = dma.done [#allocation7], 256
    $region37: #{tpu_custom_call.1} parent=1 // pred_fallthru
      _
    %v60 = vld [vmem:[#allocation3] sm:$0xff]
    %v61 = vld [vmem:[#allocation3 + $0x8] sm:$0xff]
    %v62 = vld [vmem:[#allocation3 + $0x10] sm:$0xff]
    %v63 = vld [vmem:[#allocation3 + $0x18] sm:$0xff]
    %v64 = vld [vmem:[#allocation6] sm:$0xff]
    %v65 = vld [vmem:[#allocation6 + $0x8] sm:$0xff]
    %v66 = vld [vmem:[%s2] sm:$0x3]
    %v67 = vld [vmem:[%s3] sm:$0x3]
    %s68 = sld [smem:[#allocation2]]
    %v69 = vld [vmem:[%s4] sm:$0x1]
    %v70 = vld [vmem:[%s5] sm:$0x1]
    %v72 = vperm.slane %v69, 0
    %v74 = vmul.f32 %v60, %v72
    %v75 = vmul.f32 %v61, %v72
    %v76 = vmul.f32 %v62, %v72
    %v77 = vmul.f32 %v63, %v72
    %vm78 = vcmask 261120
    %v79 = vsel %vm78, %v74, 0.0
    %80 = vadd.xlane.f32.xlu0 %v79
    %v81 = vpop.xlane.xlu0 %80
    %v82 = vsel %vm78, %v75, 0.0
    %83 = vadd.xlane.f32.xlu0 %v82
    %v84 = vpop.xlane.xlu0 %83
    %v85 = vsel %vm78, %v76, 0.0
    %86 = vadd.xlane.f32.xlu0 %v85
    %v87 = vpop.xlane.xlu0 %86
    %v88 = vsel %vm78, %v77, 0.0
    %89 = vadd.xlane.f32.xlu0 %v88
    %v90 = vpop.xlane.xlu0 %89
    %v92 = vperm.slane %v70, 0
    %v94 = vmul.f32 %v64, %v92
    %v95 = vmul.f32 %v65, %v92
    %vm96 = vcmask 130048
    %v97 = vsel %vm96, %v94, 0.0
    %98 = vadd.xlane.f32.xlu0 %v97
    %v99 = vpop.xlane.xlu0 %98
    %v100 = vsel %vm96, %v95, 0.0
    %101 = vadd.xlane.f32.xlu0 %v100
    %v102 = vpop.xlane.xlu0 %101
    %v103 = vstv %s68
    %v104 = vadd.f32 %v99, %v103
    %v105 = vadd.f32 %v102, %v103
    %v110 = vlaneseq
    %v111 = vand.u32 %v110, 127
    %v112 = vperm.slane %v81, %v111
    %v113 = vadd.s32 %v111, 4294967288
    %v114 = vperm.slane %v84, %v113
    %vm115 = vcmask 130112
    %v116 = vsel %vm115, %v114, %v112
    %v117 = vperm.slane %v87, %v111
    %v118 = vperm.slane %v90, %v113
    %v119 = vsel %vm115, %v118, %v117
    %vm120 = vcmask 1042434
    %v121 = vsel %vm120, %v116, %v116
    %vm122 = vcmask 1043459
    %v123 = vsel %vm122, %v116, %v121
    %vm124 = vcmask 1044484
    %v125 = vsel %vm124, %v116, %v123
    %vm126 = vcmask 1045509
    %v127 = vsel %vm126, %v116, %v125
    %vm128 = vcmask 1046534
    %v129 = vsel %vm128, %v116, %v127
    %vm130 = vcmask 1047559
    %v131 = vsel %vm130, %v116, %v129
    %v132 = vsel %vm120, %v119, %v119
    %v133 = vsel %vm122, %v119, %v132
    %v134 = vsel %vm124, %v119, %v133
    %v135 = vsel %vm126, %v119, %v134
    %v136 = vsel %vm128, %v119, %v135
    %v137 = vsel %vm130, %v119, %v136
    %v140 = vadd.f32 %v104, %v131
    %v141 = vadd.f32 %v105, %v137
    %v142 = vtanh.pop %v140
    %v143 = vtanh.pop %v141
    %v144 = vrot.slane %v66, 1
    %145 = vset.pattern.permute.xlu0 0
    %146 = vperm.xlu0 %145, %v66
    %v147 = vpop.permute.xlu0 %146
    %v148 = vperm.slane %v147, 0
    %149 = vset.pattern.permute.xlu0 0
    %150 = vperm.xlu0 %149, %v144
    %v151 = vpop.permute.xlu0 %150
    %v152 = vperm.slane %v151, 0
    %vm153 = vcmp.lt.s32.totalorder %v111, %v148
    %vm154 = vcmp.lt.s32.totalorder %v111, %v152
    %v155 = vlaneseq
    %v156 = vshrl.u32 %v155, 7
    %v157 = vrot.slane %v67, 1
    %v158 = vperm.slane %v67, 0
    %v159 = vperm.slane %v157, 0
    %vm160 = vcmp.lt.s32.totalorder %v156, %v158
    %vm161 = vcmp.lt.s32.totalorder %v156, %v159
    %v162 = vsel %vm153, 1, 0
    %v163 = vsel %vm154, 1, 0
    %vm164 = vcmp.eq.s32.totalorder %v162, 1
    %vm165 = vcmp.eq.s32.totalorder %v163, 1
    %v166 = vsel %vm160, 1, 0
    %v167 = vsel %vm161, 1, 0
    %168 = vset.pattern.permute.xlu0 0
    %169 = vperm.xlu0 %168, %v166
    %v170 = vpop.permute.xlu0 %169
    %171 = vset.pattern.permute.xlu0 0
    %172 = vperm.xlu0 %171, %v167
    %v173 = vpop.permute.xlu0 %172
    %vm174 = vcmp.eq.s32.totalorder %v170, 1
    %vm175 = vcmp.eq.s32.totalorder %v173, 1
    %vm176 = vmand %vm164, %vm174
    %vm177 = vmand %vm165, %vm175
    %v178 = vsel %vm176, %v142, 0.0
    %v179 = vsel %vm177, %v143, 0.0
    %v180 = vsel %vm96, %v178, 0.0
    %181 = vadd.xlane.f32.xlu0 %v180
    %v182 = vpop.xlane.xlu0 %181
    %v183 = vsel %vm96, %v179, 0.0
    %184 = vadd.xlane.f32.xlu0 %v183
    %v185 = vpop.xlane.xlu0 %184
    %v186 = vsel %vm160, %v182, 1.0
    %v187 = vsel %vm161, %v185, 1.0
    %v188 = vrcp.pop %v186
    %v189 = vmul.f32 %v186, %v188
    %v190 = vsub.f32 1.0, %v189
    %v191 = vmul.f32 %v188, %v190
    %v192 = vadd.f32 %v188, %v191
    %vm193 = vweird.f32 %v186
    %vm194 = vweird.f32 %v188
    %vm195 = vmor %vm193, %vm194
    %v196 = vsel %vm195, %v188, %v192
    %v197 = vand.u32 2147483647, %v186
    %vm198 = vcmp.eq.f32.partialorder %v197, 8.507059e+37
    %v199 = vand.u32 %v186, 2147483648
    %v200 = vor.u32 1.1754944e-38, %v199
    %v201 = vsel %vm198, %v200, %v196
    %v202 = vrcp.pop %v187
    %v203 = vmul.f32 %v187, %v202
    %v204 = vsub.f32 1.0, %v203
    %v205 = vmul.f32 %v202, %v204
    %v206 = vadd.f32 %v202, %v205
    %vm207 = vweird.f32 %v187
    %vm208 = vweird.f32 %v202
    %vm209 = vmor %vm207, %vm208
    %v210 = vsel %vm209, %v202, %v206
    %v211 = vand.u32 2147483647, %v187
    %vm212 = vcmp.eq.f32.partialorder %v211, 8.507059e+37
    %v213 = vand.u32 %v187, 2147483648
    %v214 = vor.u32 1.1754944e-38, %v213
    %v215 = vsel %vm212, %v214, %v210
    %217 = vset.pattern.permute.xlu0 0
    %218 = vperm.xlu0 %217, %v201
    %v219 = vpop.permute.xlu0 %218
    %222 = vset.pattern.permute.xlu0 0
    %223 = vperm.xlu0 %222, %v215
    %v224 = vpop.permute.xlu0 %223
    %v226 = vmul.f32 %v178, %v219
    %v227 = vmul.f32 %v179, %v224
    %v229 = vsel %vm96, %v226, 0
    %231 = vmatpush.msra.mxu0 0.0
    %232 = vmatpush.msra.mxu0 0.0
    %233 = vmatpush.msra.mxu0 0.0
    %234 = vmatpush.msra.mxu0 0.0
    %235 = vmatpush.msra.mxu0 0.0
    %236 = vmatpush.msra.mxu0 0.0
    %237 = vmatpush.msra.mxu0 0.0
    %238 = vmatpush.msra.mxu0 0.0
    %239 = vmatpush.msra.mxu0 0.0
    %240 = vmatpush.msra.mxu0 0.0
    %241 = vmatpush.msra.mxu0 0.0
    %242 = vmatpush.msra.mxu0 0.0
    %243 = vmatpush.msra.mxu0 0.0
    %244 = vmatpush.msra.mxu0 0.0
    %245 = vmatpush.msra.mxu0 %v61
    %246 = vmatpush.msra.mxu0 %v60
    %247 = vmatmul.f32.gmra.mxu0 %v229
    %v248 = vpop.f32.mrf.mxu0
    %v249 = vadd.f32 0.0, %v248
    %250 = vdwg.mxu0
    %v252 = vsel %vm96, %v227, 0
    %254 = vmatpush.msra.mxu0 0.0
    %255 = vmatpush.msra.mxu0 0.0
    %256 = vmatpush.msra.mxu0 0.0
    %257 = vmatpush.msra.mxu0 0.0
    %258 = vmatpush.msra.mxu0 0.0
    %259 = vmatpush.msra.mxu0 0.0
    %260 = vmatpush.msra.mxu0 0.0
    %261 = vmatpush.msra.mxu0 0.0
    %262 = vmatpush.msra.mxu0 0.0
    %263 = vmatpush.msra.mxu0 0.0
    %264 = vmatpush.msra.mxu0 0.0
    %265 = vmatpush.msra.mxu0 0.0
    %266 = vmatpush.msra.mxu0 0.0
    %267 = vmatpush.msra.mxu0 0.0
    %268 = vmatpush.msra.mxu0 %v63
    %269 = vmatpush.msra.mxu0 %v62
    %270 = vmatmul.f32.gmra.mxu0 %v252
    %v271 = vpop.f32.mrf.mxu0
    %v272 = vadd.f32 0.0, %v271
    %273 = vdwg.mxu0
    %274 = vst.msk [vmem:[#allocation8] sm:$0xff] %vm78, %v249
    %275 = vst.msk [vmem:[#allocation8 + $0x8] sm:$0xff] %vm78, %v272
    // Predicated region
    $region38: #{tpu_custom_call.1} parent=1 // pred_check
      _
    $region39: #{tpu_custom_call.1} parent=1 // pred_check_branch
      %277 = sbr.rel (0) target = $region41
    $region40: #{tpu_custom_call.1} parent=1 // pred_region
      %279 = vsyncadd [#allocation5], 0
      %s280 = sshll.u32 [#allocation8], 4
      %s281 = int_to_ptr.vmem [resolvable:$true] %s280
      %s282 = sshll.u32 %s7, 4
      %s283 = int_to_ptr.hbm [resolvable:$true] %s282
      %288 = dma.vmem_to_hbm [thread:$0]  %s281, 256, %s283, [#allocation5], 128, 128, 8
    $region41: #{tpu_custom_call.1} parent=1 // pred_fallthru
      _
    // Predicated region
    $region42: #{tpu_custom_call.1} parent=1 // pred_check
      _
    $region43: #{tpu_custom_call.1} parent=1 // pred_check_branch
      %290 = sbr.rel (0) target = $region45
    $region44: #{tpu_custom_call.1} parent=1 // pred_region
      %292 = dma.done [#allocation5], 256
    $region45: #{tpu_custom_call.1} parent=1 // pred_fallthru
      _
    %293 = vsyncpa [#allocation4], 1
    %294 = vsyncpa [#allocation7], 1
    %295 = vsyncpa [#allocation5], 1

</llo_original>
